<compile_context>
chip_gen: v7x
topology: tpu7x:2x2x1
jax: 0.10.0
libtpu: 0.0.40
codegen_flags: <defaults>
</compile_context>

<pallas_src>
import functools
import math

import jax
import jax.numpy as jnp
from jax.experimental import pallas as pl
from jax.experimental.pallas import tpu as pltpu


def _round_up(x, m):
    return ((x + m - 1) // m) * m


def _cdiv(a, b):
    return -(-a // b)


# ---------------- Fused MLP kernel: all layers in one grid step ----------------
def _fused_mlp_kernel(*refs, n_layers, compute_dtype):
    # refs = (x_ref, w0, b0, w1, b1, ..., w_{L-1}, b_{L-1}, o_ref)
    x_ref = refs[0]
    o_ref = refs[-1]
    h = x_ref[...].astype(compute_dtype)                       # (bt, Din) bf16
    for i in range(n_layers):
        w = refs[1 + 2 * i][...]                               # (K, N_pad) bf16 (resident)
        if w.dtype != compute_dtype:
            w = w.astype(compute_dtype)
        b = refs[2 + 2 * i][...]                               # (1, N_pad) f32 (resident)
        y = jnp.dot(h, w, preferred_element_type=jnp.float32) + b   # f32 accumulate + bias
        if i < n_layers - 1:
            h = jnp.maximum(y, 0.0).astype(compute_dtype)      # hidden: ReLU, back to bf16
        else:
            h = y                                              # head: identity activation
    o_ref[...] = h.astype(o_ref.dtype)


# ---------------- Parameter init (matches layer_init_xavier) ----------------
def init_predictor_params(key, input_units, hidden_units, output_units):
    """Xavier-uniform weights (stored transposed as (in, out)), zero biases."""
    dims = (input_units,) + tuple(hidden_units) + (output_units,)
    params = []
    for din, dout in zip(dims[:-1], dims[1:]):
        key, sub = jax.random.split(key)
        a = math.sqrt(6.0 / (din + dout))
        w = jax.random.uniform(sub, (din, dout), jnp.float32, -a, a)
        b = jnp.zeros((1, dout), jnp.float32)
        params.append((w, b))
    return params


def prepare_predictor(params, *, param_dtype=jnp.bfloat16):
    """Pad output dims (and hidden K dims) to multiples of 128; layer-0 K stays exact.

    Zero padding is exact: padded hidden columns stay 0 through bias+ReLU and multiply
    against zero weight rows of the next layer.
    """
    padded = []
    for li, (w, b) in enumerate(params):
        din, dout = w.shape
        din_p = din if li == 0 else _round_up(din, 128)
        dout_p = _round_up(dout, 128)
        wp = jnp.zeros((din_p, dout_p), param_dtype).at[:din, :dout].set(
            w.astype(param_dtype))
        bp = jnp.zeros((1, dout_p), jnp.float32).at[:, :dout].set(
            b.astype(jnp.float32))
        padded.append((wp, bp))
    return padded


# ---------------- Predictor forward (single fused pallas_call) ----------------
@functools.partial(
    jax.jit,
    static_argnames=("output_units", "compute_dtype", "out_dtype", "max_batch_tile"))
def predictor_forward(padded_params, x, *, output_units,
                      compute_dtype=jnp.bfloat16, out_dtype=None, max_batch_tile=256):
    # FCNetwork.forward: flatten anything with ndim > 2
    if x.ndim > 2:
        x = x.reshape(x.shape[0], -1)
    B, Din = x.shape
    n_layers = len(padded_params)
    dout_p = padded_params[-1][0].shape[1]
    out_dtype = x.dtype if out_dtype is None else out_dtype

    # ---- Batch tiling: balanced tiles, >=2 grid steps once B >= 32 (v7x 2-TC split).
    sub = 8 if jnp.dtype(x.dtype).itemsize >= 4 else 16
    n_tiles = _cdiv(B, max_batch_tile)
    if B >= 32:
        n_tiles = max(n_tiles, 2)
    bt = _round_up(_cdiv(B, n_tiles), sub)
    grid = _cdiv(B, bt)   # ragged last tile handled by Pallas (OOB writes dropped)

    # ---- BlockSpecs: batch-tiled activations/output; weights & biases whole-array
    # resident in VMEM (single-buffered).
    in_specs = [pl.BlockSpec((bt, Din), lambda i: (i, 0))]
    flat_args = [x]
    for wp, bp in padded_params:
        in_specs.append(pl.BlockSpec(memory_space=pltpu.MemorySpace.VMEM))
        in_specs.append(pl.BlockSpec(memory_space=pltpu.MemorySpace.VMEM))
        flat_args += [wp, bp]

    # ---- VMEM budget: generation-aware cap with headroom; account for the widest
    # layer (hidden layers may be wider than input/output) and live intermediates.
    try:
        info = pltpu.get_tpu_info()
        vmem_cap = int(getattr(info, "vmem_capacity_bytes", 0)) or 64 * 1024 * 1024
    except Exception:  # pragma: no cover - conservative fallback
        vmem_cap = 64 * 1024 * 1024
    headroom = 12 * 1024 * 1024
    max_width = max([Din] + [wp.shape[1] for wp, _ in padded_params])
    weight_bytes = sum(int(wp.size) * wp.dtype.itemsize + int(bp.size) * bp.dtype.itemsize
                       for wp, bp in padded_params)
    act_bytes = (2 * bt * Din * jnp.dtype(x.dtype).itemsize          # dbl-buffered in tile
                 + 2 * bt * dout_p * jnp.dtype(out_dtype).itemsize)  # dbl-buffered out tile
    interm_bytes = 3 * bt * max_width * 4                            # live f32 temporaries
    needed = weight_bytes + act_bytes + interm_bytes
    vmem_limit = int(min(max(vmem_cap - headroom, 16 * 1024 * 1024),
                         max(32 * 1024 * 1024, 2 * needed)))

    # ---- Cost estimate (advisory).
    flops = sum(2 * B * wp.shape[0] * wp.shape[1] for wp, _ in padded_params)
    bytes_accessed = int(x.size * jnp.dtype(x.dtype).itemsize
                         + B * dout_p * jnp.dtype(out_dtype).itemsize
                         + weight_bytes)

    kernel = functools.partial(_fused_mlp_kernel,
                               n_layers=n_layers, compute_dtype=compute_dtype)
    out_p = pl.pallas_call(
        kernel,
        out_shape=jax.ShapeDtypeStruct((B, dout_p), out_dtype),
        grid=(grid,),
        in_specs=in_specs,
        out_specs=pl.BlockSpec((bt, dout_p), lambda i: (i, 0)),
        compiler_params=pltpu.CompilerParams(
            dimension_semantics=("parallel",),        # v7x: shard batch over 2 TCs
            vmem_limit_bytes=vmem_limit),
        cost_estimate=pl.CostEstimate(flops=flops, transcendentals=0,
                                      bytes_accessed=bytes_accessed),
    )(*flat_args)

    # Slice the padded output lanes back off (batch dim is already exact).
    return out_p[:, :output_units]


if __name__ == "__main__":
    key = jax.random.PRNGKey(0)

    batch = 8
    input_units = 32
    hidden_units = (64, 32)
    output_units = 8

    kx, kp = jax.random.split(key)
    # >2-D input exercises the FCNetwork flatten path: (8, 2, 4, 4) -> (8, 32)
    x = jax.random.normal(kx, (batch, 2, 4, 4), jnp.float32)
    params = init_predictor_params(kp, input_units, hidden_units, output_units)
    padded_params = prepare_predictor(params)

    out = predictor_forward(padded_params, x, output_units=output_units)
    jax.block_until_ready(out)

    # pure-JAX f32 reference with the original (un-padded, f32) parameters
    ref = x.reshape(batch, -1)
    for w, b in params[:-1]:
        ref = jnp.maximum(ref @ w + b, 0.0)
    ref = ref @ params[-1][0] + params[-1][1]

    assert out.shape == (batch, output_units)
    # bf16 MXU inputs + bf16 weight storage -> compare at bf16-level tolerance
    assert jnp.allclose(out, ref, atol=5e-2, rtol=5e-2), float(jnp.max(jnp.abs(out - ref)))

    print("KERNEL_OK")
</pallas_src>

<mosaic_0001>
module attributes {stable_mosaic.version = 11 : i64} {
  func.func @_fused_mlp_kernel(%arg0: i32, %arg1: memref<8x32xf32, #tpu.memory_space<vmem>>, %arg2: memref<32x128xbf16, #tpu.memory_space<vmem>>, %arg3: memref<1x128xf32, #tpu.memory_space<vmem>>, %arg4: memref<128x128xbf16, #tpu.memory_space<vmem>>, %arg5: memref<1x128xf32, #tpu.memory_space<vmem>>, %arg6: memref<128x128xbf16, #tpu.memory_space<vmem>>, %arg7: memref<1x128xf32, #tpu.memory_space<vmem>>, %arg8: memref<8x128xf32, #tpu.memory_space<vmem>>) attributes {dimension_semantics = [#tpu.dimension_semantics<parallel>], iteration_bounds = array<i64: 1>, scalar_prefetch = 0 : i64, scratch_operands = 0 : i64, tpu.core_type = #tpu.core_type<tc>, window_params = [{transform_indices = @transform_0, window_bounds = array<i64: 8, 32>}, {pipeline_mode = #tpu.pipeline_mode<synchronous>, transform_indices = @transform_1, window_bounds = array<i64: 32, 128>}, {pipeline_mode = #tpu.pipeline_mode<synchronous>, transform_indices = @transform_2, window_bounds = array<i64: 1, 128>}, {pipeline_mode = #tpu.pipeline_mode<synchronous>, transform_indices = @transform_3, window_bounds = array<i64: 128, 128>}, {pipeline_mode = #tpu.pipeline_mode<synchronous>, transform_indices = @transform_4, window_bounds = array<i64: 1, 128>}, {pipeline_mode = #tpu.pipeline_mode<synchronous>, transform_indices = @transform_5, window_bounds = array<i64: 128, 128>}, {pipeline_mode = #tpu.pipeline_mode<synchronous>, transform_indices = @transform_6, window_bounds = array<i64: 1, 128>}, {transform_indices = @transform_7, window_bounds = array<i64: 8, 128>}]} {
    %c0 = arith.constant 0 : index
    %c0_0 = arith.constant 0 : index
    %0 = vector.load %arg1[%c0, %c0_0] : memref<8x32xf32, #tpu.memory_space<vmem>>, vector<8x32xf32>
    %1 = arith.truncf %0 : vector<8x32xf32> to vector<8x32xbf16>
    %c0_1 = arith.constant 0 : index
    %c0_2 = arith.constant 0 : index
    %2 = vector.load %arg2[%c0_1, %c0_2] : memref<32x128xbf16, #tpu.memory_space<vmem>>, vector<32x128xbf16>
    %c0_3 = arith.constant 0 : index
    %c0_4 = arith.constant 0 : index
    %3 = vector.load %arg3[%c0_3, %c0_4] : memref<1x128xf32, #tpu.memory_space<vmem>>, vector<1x128xf32>
    %cst = arith.constant dense<0.000000e+00> : vector<8x128xf32>
    %4 = tpu.matmul %1, %2, %cst {dimension_numbers = #tpu.dot_dimension_numbers<[1], [0], [0], [1], [0, 0, 1, 1], [], []>} : vector<8x32xbf16>, vector<32x128xbf16>, vector<8x128xf32> -> vector<8x128xf32>
    %5 = vector.broadcast %3 : vector<1x128xf32> to vector<8x128xf32>
    %6 = arith.addf %4, %5 : vector<8x128xf32>
    %cst_5 = arith.constant 0.000000e+00 : f32
    %7 = vector.broadcast %cst_5 : f32 to vector<8x128xf32>
    %8 = arith.maximumf %6, %7 : vector<8x128xf32>
    %9 = arith.truncf %8 : vector<8x128xf32> to vector<8x128xbf16>
    %c0_6 = arith.constant 0 : index
    %c0_7 = arith.constant 0 : index
    %10 = vector.load %arg4[%c0_6, %c0_7] : memref<128x128xbf16, #tpu.memory_space<vmem>>, vector<128x128xbf16>
    %c0_8 = arith.constant 0 : index
    %c0_9 = arith.constant 0 : index
    %11 = vector.load %arg5[%c0_8, %c0_9] : memref<1x128xf32, #tpu.memory_space<vmem>>, vector<1x128xf32>
    %cst_10 = arith.constant dense<0.000000e+00> : vector<8x128xf32>
    %12 = tpu.matmul %9, %10, %cst_10 {dimension_numbers = #tpu.dot_dimension_numbers<[1], [0], [0], [1], [0, 0, 1, 1], [], []>} : vector<8x128xbf16>, vector<128x128xbf16>, vector<8x128xf32> -> vector<8x128xf32>
    %13 = vector.broadcast %11 : vector<1x128xf32> to vector<8x128xf32>
    %14 = arith.addf %12, %13 : vector<8x128xf32>
    %cst_11 = arith.constant 0.000000e+00 : f32
    %15 = vector.broadcast %cst_11 : f32 to vector<8x128xf32>
    %16 = arith.maximumf %14, %15 : vector<8x128xf32>
    %17 = arith.truncf %16 : vector<8x128xf32> to vector<8x128xbf16>
    %c0_12 = arith.constant 0 : index
    %c0_13 = arith.constant 0 : index
    %18 = vector.load %arg6[%c0_12, %c0_13] : memref<128x128xbf16, #tpu.memory_space<vmem>>, vector<128x128xbf16>
    %c0_14 = arith.constant 0 : index
    %c0_15 = arith.constant 0 : index
    %19 = vector.load %arg7[%c0_14, %c0_15] : memref<1x128xf32, #tpu.memory_space<vmem>>, vector<1x128xf32>
    %cst_16 = arith.constant dense<0.000000e+00> : vector<8x128xf32>
    %20 = tpu.matmul %17, %18, %cst_16 {dimension_numbers = #tpu.dot_dimension_numbers<[1], [0], [0], [1], [0, 0, 1, 1], [], []>} : vector<8x128xbf16>, vector<128x128xbf16>, vector<8x128xf32> -> vector<8x128xf32>
    %21 = vector.broadcast %19 : vector<1x128xf32> to vector<8x128xf32>
    %22 = arith.addf %20, %21 : vector<8x128xf32>
    %c0_17 = arith.constant 0 : index
    %c0_18 = arith.constant 0 : index
    %23 = vector.load %arg8[%c0_17, %c0_18] : memref<8x128xf32, #tpu.memory_space<vmem>>, vector<8x128xf32>
    tpu.vector_store %arg8[%c0_17, %c0_18], %22 {strides = array<i32>} : memref<8x128xf32, #tpu.memory_space<vmem>>, vector<8x128xf32>,
    return
  }
  func.func @transform_0(%arg0: i32) -> (i32, i32) {
    %c0_i32 = arith.constant 0 : i32
    %c0_i32_0 = arith.constant 0 : i32
    return %arg0, %c0_i32 : i32, i32
  }
  func.func @transform_1(%arg0: i32) -> (i32, i32) {
    %c0_i32 = arith.constant 0 : i32
    %c0_i32_0 = arith.constant 0 : i32
    %c0_i32_1 = arith.constant 0 : i32
    return %c0_i32, %c0_i32_0 : i32, i32
  }
  func.func @transform_2(%arg0: i32) -> (i32, i32) {
    %c0_i32 = arith.constant 0 : i32
    %c0_i32_0 = arith.constant 0 : i32
    %c0_i32_1 = arith.constant 0 : i32
    return %c0_i32, %c0_i32_0 : i32, i32
  }
  func.func @transform_3(%arg0: i32) -> (i32, i32) {
    %c0_i32 = arith.constant 0 : i32
    %c0_i32_0 = arith.constant 0 : i32
    %c0_i32_1 = arith.constant 0 : i32
    return %c0_i32, %c0_i32_0 : i32, i32
  }
  func.func @transform_4(%arg0: i32) -> (i32, i32) {
    %c0_i32 = arith.constant 0 : i32
    %c0_i32_0 = arith.constant 0 : i32
    %c0_i32_1 = arith.constant 0 : i32
    return %c0_i32, %c0_i32_0 : i32, i32
  }
  func.func @transform_5(%arg0: i32) -> (i32, i32) {
    %c0_i32 = arith.constant 0 : i32
    %c0_i32_0 = arith.constant 0 : i32
    %c0_i32_1 = arith.constant 0 : i32
    return %c0_i32, %c0_i32_0 : i32, i32
  }
  func.func @transform_6(%arg0: i32) -> (i32, i32) {
    %c0_i32 = arith.constant 0 : i32
    %c0_i32_0 = arith.constant 0 : i32
    %c0_i32_1 = arith.constant 0 : i32
    return %c0_i32, %c0_i32_0 : i32, i32
  }
  func.func @transform_7(%arg0: i32) -> (i32, i32) {
    %c0_i32 = arith.constant 0 : i32
    %c0_i32_0 = arith.constant 0 : i32
    return %arg0, %c0_i32 : i32, i32
  }
}

</mosaic_0001>

<llo_original>
// kernel: predictor_forward.1
$region0: #{predictor_forward.1}
  #allocation0 [shape = 'u32[]', space=smem, size = 0x4, offset = 0x4, fixed_abs, tag = 'smem constant byte address 0x4 - core index']
  #allocation1 [shape = 'u32[144,128]{1,0:T(1,128)}', space=vmem, size = 0x12000, scoped, tag = 'internal scratch']
  %s0 = inlined_call_operand.vmem [shape: f32[8,32], index: 0, kind: input, shape index: {}]
  %s1 = inlined_call_operand.vmem [shape: bf16[32,128], index: 1, kind: input, shape index: {}]
  %s2 = inlined_call_operand.vmem [shape: f32[1,128], index: 2, kind: input, shape index: {}]
  %s3 = inlined_call_operand.hbm [shape: bf16[128,128], index: 3, kind: input, shape index: {}]
  %s4 = inlined_call_operand.vmem [shape: f32[1,128], index: 4, kind: input, shape index: {}]
  %s5 = inlined_call_operand.hbm [shape: bf16[128,128], index: 5, kind: input, shape index: {}]
  %s6 = inlined_call_operand.vmem [shape: f32[1,128], index: 6, kind: input, shape index: {}]
  %s7 = inlined_call_operand.hbm [shape: f32[8,128], index: 7, kind: output, shape index: {}]
  %s8 = sld [smem:[#allocation0]]
  $region46: #{predictor_forward.1} parent=0
    _
  %s10 = ssub.s32 1, %s8
  %s11 = scalar_select 0, %s10, %s8
  $region1: #{predictor_forward.1} parent=0
    #allocation2 [shape = 'u8[32768]{0}', space=vmem, size = 0x8000, scoped, tag = 'input window, operand 3, single buffered']
    #allocation3 [shape = 's32[1]{0}', space=sflag, size = 0x4, scoped, tag = 'scoped memory for predictor_forward.1']
    #allocation4 [shape = 's32[1]{0}', space=sflag, size = 0x4, scoped, tag = 'scoped memory for predictor_forward.1']
    #allocation5 [shape = 'u8[32768]{0}', space=vmem, size = 0x8000, scoped, tag = 'input window, operand 5, single buffered']
    #allocation6 [shape = 's32[1]{0}', space=sflag, size = 0x4, scoped, tag = 'scoped memory for predictor_forward.1']
    #allocation7 [shape = 'u8[4096]{0}', space=vmem, size = 0x1000, scoped, tag = 'output window, operand 0, single buffered']
    %12 = vsyncpa [#allocation3], 0
    %13 = vsyncpa [#allocation6], 0
    %14 = vsyncpa [#allocation4], 0
    // Predicated region
    $region2: #{predictor_forward.1} parent=1 // pred_check
      _
    $region3: #{predictor_forward.1} parent=1 // pred_check_branch
      %16 = sbr.rel (0) target = $region5
    $region4: #{predictor_forward.1} parent=1 // pred_region
      _
    $region5: #{predictor_forward.1} parent=1 // pred_fallthru
      _
    // Predicated region
    $region6: #{predictor_forward.1} parent=1 // pred_check
      _
    $region7: #{predictor_forward.1} parent=1 // pred_check_branch
      %18 = sbr.rel (0) target = $region9
    $region8: #{predictor_forward.1} parent=1 // pred_region
      _
    $region9: #{predictor_forward.1} parent=1 // pred_fallthru
      _
    // Predicated region
    $region10: #{predictor_forward.1} parent=1 // pred_check
      _
    $region11: #{predictor_forward.1} parent=1 // pred_check_branch
      %20 = sbr.rel (0) target = $region13
    $region12: #{predictor_forward.1} parent=1 // pred_region
      _
    $region13: #{predictor_forward.1} parent=1 // pred_fallthru
      _
    // Predicated region
    $region14: #{predictor_forward.1} parent=1 // pred_check
      _
    $region15: #{predictor_forward.1} parent=1 // pred_check_branch
      %22 = sbr.rel (0) target = $region17
    $region16: #{predictor_forward.1} parent=1 // pred_region
      %s24 = ssub.s32 1024, 1024
      %25 = vsyncadd [#allocation3], %s24
      %s26 = sshll.u32 [#allocation2], 4
      %s27 = int_to_ptr.vmem [resolvable:$true] %s26
      %32 = dma.hbm_to_vmem [thread:$0]  %s3, 1024, %s27, [#allocation3], 64, 64, 4
    $region17: #{predictor_forward.1} parent=1 // pred_fallthru
      _
    // Predicated region
    $region18: #{predictor_forward.1} parent=1 // pred_check
      _
    $region19: #{predictor_forward.1} parent=1 // pred_check_branch
      %34 = sbr.rel (0) target = $region21
    $region20: #{predictor_forward.1} parent=1 // pred_region
      _
    $region21: #{predictor_forward.1} parent=1 // pred_fallthru
      _
    // Predicated region
    $region22: #{predictor_forward.1} parent=1 // pred_check
      _
    $region23: #{predictor_forward.1} parent=1 // pred_check_branch
      %36 = sbr.rel (0) target = $region25
    $region24: #{predictor_forward.1} parent=1 // pred_region
      %s38 = ssub.s32 1024, 1024
      %39 = vsyncadd [#allocation6], %s38
      %s40 = sshll.u32 [#allocation5], 4
      %s41 = int_to_ptr.vmem [resolvable:$true] %s40
      %46 = dma.hbm_to_vmem [thread:$0]  %s5, 1024, %s41, [#allocation6], 64, 64, 4
    $region25: #{predictor_forward.1} parent=1 // pred_fallthru
      _
    // Predicated region
    $region26: #{predictor_forward.1} parent=1 // pred_check
      _
    $region27: #{predictor_forward.1} parent=1 // pred_check_branch
      %48 = sbr.rel (0) target = $region29
    $region28: #{predictor_forward.1} parent=1 // pred_region
      _
    $region29: #{predictor_forward.1} parent=1 // pred_fallthru
      _
    // Predicated region
    $region30: #{predictor_forward.1} parent=1 // pred_check
      _
    $region31: #{predictor_forward.1} parent=1 // pred_check_branch
      %50 = sbr.rel (0) target = $region33
    $region32: #{predictor_forward.1} parent=1 // pred_region
      %51 = dma.done [#allocation3], 1024
    $region33: #{predictor_forward.1} parent=1 // pred_fallthru
      _
    // Predicated region
    $region34: #{predictor_forward.1} parent=1 // pred_check
      _
    $region35: #{predictor_forward.1} parent=1 // pred_check_branch
      %53 = sbr.rel (0) target = $region37
    $region36: #{predictor_forward.1} parent=1 // pred_region
      %54 = dma.done [#allocation6], 1024
    $region37: #{predictor_forward.1} parent=1 // pred_fallthru
      _
    %v56 = vld [vmem:[%s0] sm:$0xff]
    %v57 = vpack.c.bf16 %v56, %v56
    %v58 = vld [vmem:[%s1] sm:$0xf]
    %v59 = vld [vmem:[%s1 + $0x4] sm:$0xf]
    %v60 = vld [vmem:[%s1 + $0x8] sm:$0xf]
    %v61 = vld [vmem:[%s1 + $0xc] sm:$0xf]
    %v62 = vld [vmem:[%s2] sm:$0x1]
    %v64 = vlaneseq
    %v65 = vshrl.u32 %v64, 7
    %v66 = vsub.s32 0, %v65
    %v67 = vrot.slane %v62, %v66
    %v73 = vunpack.c.l.b16 %v58
    %v74 = vunpack.c.l.b16 %v59
    %v75 = vunpack.c.l.b16 %v60
    %v76 = vunpack.c.l.b16 %v61
    %v77 = vpack.c.b16 %v74, %v73
    %v78 = vpack.c.b16 %v76, %v75
    %vm81 = vcmask 261120
    %v83 = vsel %vm81, %v57, 0
    %85 = vmatprep.subr.bf16.mxu0 0
    %86 = vmatpush1.bf16.msra.mxu0 %v77
    %87 = vmatprep.subr.bf16.mxu0 0
    %88 = vmatpush1.bf16.msra.mxu0 %v78
    %89 = vmatprep.subr.bf16.mxu0 0
    %90 = vmatpush1.bf16.msra.mxu0 0
    %91 = vmatprep.subr.bf16.mxu0 0
    %92 = vmatpush1.bf16.msra.mxu0 0
    %93 = vmatprep.subr.bf16.mxu0 0
    %94 = vmatpush1.bf16.msra.mxu0 0
    %95 = vmatprep.subr.bf16.mxu0 0
    %96 = vmatpush1.bf16.msra.mxu0 0
    %97 = vmatprep.subr.bf16.mxu0 0
    %98 = vmatpush1.bf16.msra.mxu0 0
    %99 = vmatprep.subr.bf16.mxu0 0
    %100 = vmatpush1.bf16.msra.mxu0 0
    %101 = vmatprep.subr.bf16.mxu0 0
    %102 = vmatpush1.bf16.msra.mxu0 0
    %103 = vmatprep.subr.bf16.mxu0 0
    %104 = vmatpush1.bf16.msra.mxu0 0
    %105 = vmatprep.subr.bf16.mxu0 0
    %106 = vmatpush1.bf16.msra.mxu0 0
    %107 = vmatprep.subr.bf16.mxu0 0
    %108 = vmatpush1.bf16.msra.mxu0 0
    %109 = vmatprep.subr.bf16.mxu0 0
    %110 = vmatpush1.bf16.msra.mxu0 0
    %111 = vmatprep.subr.bf16.mxu0 0
    %112 = vmatpush1.bf16.msra.mxu0 0
    %113 = vmatprep.subr.bf16.mxu0 0
    %114 = vmatpush1.bf16.msra.mxu0 0
    %115 = vmatprep.subr.bf16.mxu0 0
    %116 = vmatpush1.bf16.msra.mxu0 0
    %117 = vmatprep.mubr.bf16.mxu0 0
    %118 = vmatmul.mubr.bf16.gmra.mrb[0].mxu0 %v83
    %v119 = vpop.f32.mrb[0].mxu0
    %v120 = vadd.f32 %v67, %v119
    %v121 = vpop.f32.mrb[0].mxu0
    %v122 = vpop.f32.mrb[0].mxu0
    %v123 = vpop.f32.mrb[0].mxu0
    %124 = vdwg.mxu0
    %v125 = vmax.f32 %v120, 0.0
    %v126 = vpack.c.bf16 %v125, %v125
    %v127 = vld [vmem:[#allocation2] sm:$0xf]
    %v128 = vld [vmem:[#allocation2 + $0x4] sm:$0xf]
    %v129 = vld [vmem:[#allocation2 + $0x8] sm:$0xf]
    %v130 = vld [vmem:[#allocation2 + $0xc] sm:$0xf]
    %v131 = vld [vmem:[#allocation2 + $0x10] sm:$0xf]
    %v132 = vld [vmem:[#allocation2 + $0x14] sm:$0xf]
    %v133 = vld [vmem:[#allocation2 + $0x18] sm:$0xf]
    %v134 = vld [vmem:[#allocation2 + $0x1c] sm:$0xf]
    %v135 = vld [vmem:[#allocation2 + $0x20] sm:$0xf]
    %v136 = vld [vmem:[#allocation2 + $0x24] sm:$0xf]
    %v137 = vld [vmem:[#allocation2 + $0x28] sm:$0xf]
    %v138 = vld [vmem:[#allocation2 + $0x2c] sm:$0xf]
    %v139 = vld [vmem:[#allocation2 + $0x30] sm:$0xf]
    %v140 = vld [vmem:[#allocation2 + $0x34] sm:$0xf]
    %v141 = vld [vmem:[#allocation2 + $0x38] sm:$0xf]
    %v142 = vld [vmem:[#allocation2 + $0x3c] sm:$0xf]
    %v143 = vld [vmem:[%s4] sm:$0x1]
    %v145 = vlaneseq
    %v146 = vshrl.u32 %v145, 7
    %v147 = vsub.s32 0, %v146
    %v148 = vrot.slane %v143, %v147
    %v166 = vunpack.c.l.b16 %v127
    %v167 = vunpack.c.l.b16 %v128
    %v168 = vunpack.c.l.b16 %v129
    %v169 = vunpack.c.l.b16 %v130
    %v170 = vunpack.c.l.b16 %v131
    %v171 = vunpack.c.l.b16 %v132
    %v172 = vunpack.c.l.b16 %v133
    %v173 = vunpack.c.l.b16 %v134
    %v174 = vunpack.c.l.b16 %v135
    %v175 = vunpack.c.l.b16 %v136
    %v176 = vunpack.c.l.b16 %v137
    %v177 = vunpack.c.l.b16 %v138
    %v178 = vunpack.c.l.b16 %v139
    %v179 = vunpack.c.l.b16 %v140
    %v180 = vunpack.c.l.b16 %v141
    %v181 = vunpack.c.l.b16 %v142
    %v182 = vpack.c.b16 %v167, %v166
    %v183 = vpack.c.b16 %v169, %v168
    %v184 = vpack.c.b16 %v171, %v170
    %v185 = vpack.c.b16 %v173, %v172
    %v186 = vpack.c.b16 %v175, %v174
    %v187 = vpack.c.b16 %v177, %v176
    %v188 = vpack.c.b16 %v179, %v178
    %v189 = vpack.c.b16 %v181, %v180
    %198 = vmatprep.subr.bf16.mxu0 0
    %199 = vmatpush1.bf16.msra.mxu0 %v182
    %200 = vmatprep.subr.bf16.mxu0 0
    %201 = vmatpush1.bf16.msra.mxu0 %v183
    %202 = vmatprep.subr.bf16.mxu0 0
    %203 = vmatpush1.bf16.msra.mxu0 %v184
    %204 = vmatprep.subr.bf16.mxu0 0
    %205 = vmatpush1.bf16.msra.mxu0 %v185
    %206 = vmatprep.subr.bf16.mxu0 0
    %207 = vmatpush1.bf16.msra.mxu0 %v186
    %208 = vmatprep.subr.bf16.mxu0 0
    %209 = vmatpush1.bf16.msra.mxu0 %v187
    %210 = vmatprep.subr.bf16.mxu0 0
    %211 = vmatpush1.bf16.msra.mxu0 %v188
    %212 = vmatprep.subr.bf16.mxu0 0
    %213 = vmatpush1.bf16.msra.mxu0 %v189
    %214 = vmatprep.subr.bf16.mxu0 0
    %215 = vmatpush1.bf16.msra.mxu0 0
    %216 = vmatprep.subr.bf16.mxu0 0
    %217 = vmatpush1.bf16.msra.mxu0 0
    %218 = vmatprep.subr.bf16.mxu0 0
    %219 = vmatpush1.bf16.msra.mxu0 0
    %220 = vmatprep.subr.bf16.mxu0 0
    %221 = vmatpush1.bf16.msra.mxu0 0
    %222 = vmatprep.subr.bf16.mxu0 0
    %223 = vmatpush1.bf16.msra.mxu0 0
    %224 = vmatprep.subr.bf16.mxu0 0
    %225 = vmatpush1.bf16.msra.mxu0 0
    %226 = vmatprep.subr.bf16.mxu0 0
    %227 = vmatpush1.bf16.msra.mxu0 0
    %228 = vmatprep.subr.bf16.mxu0 0
    %229 = vmatpush1.bf16.msra.mxu0 0
    %230 = vmatprep.mubr.bf16.mxu0 0
    %231 = vmatmul.mubr.bf16.gmra.mrb[0].mxu0 %v126
    %v232 = vpop.f32.mrb[0].mxu0
    %v233 = vadd.f32 %v148, %v232
    %v234 = vpop.f32.mrb[0].mxu0
    %v235 = vpop.f32.mrb[0].mxu0
    %v236 = vpop.f32.mrb[0].mxu0
    %237 = vdwg.mxu0
    %v238 = vmax.f32 %v233, 0.0
    %v239 = vpack.c.bf16 %v238, %v238
    %v240 = vld [vmem:[#allocation5] sm:$0xf]
    %v241 = vld [vmem:[#allocation5 + $0x4] sm:$0xf]
    %v242 = vld [vmem:[#allocation5 + $0x8] sm:$0xf]
    %v243 = vld [vmem:[#allocation5 + $0xc] sm:$0xf]
    %v244 = vld [vmem:[#allocation5 + $0x10] sm:$0xf]
    %v245 = vld [vmem:[#allocation5 + $0x14] sm:$0xf]
    %v246 = vld [vmem:[#allocation5 + $0x18] sm:$0xf]
    %v247 = vld [vmem:[#allocation5 + $0x1c] sm:$0xf]
    %v248 = vld [vmem:[#allocation5 + $0x20] sm:$0xf]
    %v249 = vld [vmem:[#allocation5 + $0x24] sm:$0xf]
    %v250 = vld [vmem:[#allocation5 + $0x28] sm:$0xf]
    %v251 = vld [vmem:[#allocation5 + $0x2c] sm:$0xf]
    %v252 = vld [vmem:[#allocation5 + $0x30] sm:$0xf]
    %v253 = vld [vmem:[#allocation5 + $0x34] sm:$0xf]
    %v254 = vld [vmem:[#allocation5 + $0x38] sm:$0xf]
    %v255 = vld [vmem:[#allocation5 + $0x3c] sm:$0xf]
    %v256 = vld [vmem:[%s6] sm:$0x1]
    %v258 = vlaneseq
    %v259 = vshrl.u32 %v258, 7
    %v260 = vsub.s32 0, %v259
    %v261 = vrot.slane %v256, %v260
    %v279 = vunpack.c.l.b16 %v240
    %v280 = vunpack.c.l.b16 %v241
    %v281 = vunpack.c.l.b16 %v242
    %v282 = vunpack.c.l.b16 %v243
    %v283 = vunpack.c.l.b16 %v244
    %v284 = vunpack.c.l.b16 %v245
    %v285 = vunpack.c.l.b16 %v246
    %v286 = vunpack.c.l.b16 %v247
    %v287 = vunpack.c.l.b16 %v248
    %v288 = vunpack.c.l.b16 %v249
    %v289 = vunpack.c.l.b16 %v250
    %v290 = vunpack.c.l.b16 %v251
    %v291 = vunpack.c.l.b16 %v252
    %v292 = vunpack.c.l.b16 %v253
    %v293 = vunpack.c.l.b16 %v254
    %v294 = vunpack.c.l.b16 %v255
    %v295 = vpack.c.b16 %v280, %v279
    %v296 = vpack.c.b16 %v282, %v281
    %v297 = vpack.c.b16 %v284, %v283
    %v298 = vpack.c.b16 %v286, %v285
    %v299 = vpack.c.b16 %v288, %v287
    %v300 = vpack.c.b16 %v290, %v289
    %v301 = vpack.c.b16 %v292, %v291
    %v302 = vpack.c.b16 %v294, %v293
    %311 = vmatprep.subr.bf16.mxu0 0
    %312 = vmatpush1.bf16.msra.mxu0 %v295
    %313 = vmatprep.subr.bf16.mxu0 0
    %314 = vmatpush1.bf16.msra.mxu0 %v296
    %315 = vmatprep.subr.bf16.mxu0 0
    %316 = vmatpush1.bf16.msra.mxu0 %v297
    %317 = vmatprep.subr.bf16.mxu0 0
    %318 = vmatpush1.bf16.msra.mxu0 %v298
    %319 = vmatprep.subr.bf16.mxu0 0
    %320 = vmatpush1.bf16.msra.mxu0 %v299
    %321 = vmatprep.subr.bf16.mxu0 0
    %322 = vmatpush1.bf16.msra.mxu0 %v300
    %323 = vmatprep.subr.bf16.mxu0 0
    %324 = vmatpush1.bf16.msra.mxu0 %v301
    %325 = vmatprep.subr.bf16.mxu0 0
    %326 = vmatpush1.bf16.msra.mxu0 %v302
    %327 = vmatprep.subr.bf16.mxu0 0
    %328 = vmatpush1.bf16.msra.mxu0 0
    %329 = vmatprep.subr.bf16.mxu0 0
    %330 = vmatpush1.bf16.msra.mxu0 0
    %331 = vmatprep.subr.bf16.mxu0 0
    %332 = vmatpush1.bf16.msra.mxu0 0
    %333 = vmatprep.subr.bf16.mxu0 0
    %334 = vmatpush1.bf16.msra.mxu0 0
    %335 = vmatprep.subr.bf16.mxu0 0
    %336 = vmatpush1.bf16.msra.mxu0 0
    %337 = vmatprep.subr.bf16.mxu0 0
    %338 = vmatpush1.bf16.msra.mxu0 0
    %339 = vmatprep.subr.bf16.mxu0 0
    %340 = vmatpush1.bf16.msra.mxu0 0
    %341 = vmatprep.subr.bf16.mxu0 0
    %342 = vmatpush1.bf16.msra.mxu0 0
    %343 = vmatprep.mubr.bf16.mxu0 0
    %344 = vmatmul.mubr.bf16.gmra.mrb[0].mxu0 %v239
    %v345 = vpop.f32.mrb[0].mxu0
    %v346 = vadd.f32 %v261, %v345
    %v347 = vpop.f32.mrb[0].mxu0
    %v348 = vpop.f32.mrb[0].mxu0
    %v349 = vpop.f32.mrb[0].mxu0
    %350 = vdwg.mxu0
    %351 = vst [vmem:[#allocation7] sm:$0xff] %v346
    // Predicated region
    $region38: #{predictor_forward.1} parent=1 // pred_check
      _
    $region39: #{predictor_forward.1} parent=1 // pred_check_branch
      %353 = sbr.rel (0) target = $region41
    $region40: #{predictor_forward.1} parent=1 // pred_region
      %s355 = ssub.s32 128, 128
      %356 = vsyncadd [#allocation4], %s355
      %s358 = sshll.u32 [#allocation7], 4
      %s359 = int_to_ptr.vmem [resolvable:$true] %s358
      %361 = dma.vmem_to_hbm [thread:$0]  %s359, 128, %s7, [#allocation4]
    $region41: #{predictor_forward.1} parent=1 // pred_fallthru
      _
    // Predicated region
    $region42: #{predictor_forward.1} parent=1 // pred_check
      _
    $region43: #{predictor_forward.1} parent=1 // pred_check_branch
      %363 = sbr.rel (0) target = $region45
    $region44: #{predictor_forward.1} parent=1 // pred_region
      %364 = dma.done [#allocation4], 128
    $region45: #{predictor_forward.1} parent=1 // pred_fallthru
      _
    %365 = vsyncpa [#allocation3], 1
    %366 = vsyncpa [#allocation6], 1
    %367 = vsyncpa [#allocation4], 1

</llo_original>
